<compile_context>
chip_gen: v5e
topology: v5e:2x2
jax: 0.10.0
libtpu: 0.0.40
codegen_flags: <defaults>
</compile_context>

<pallas_src>
import functools
from typing import List, NamedTuple

import jax
import jax.numpy as jnp
from jax.experimental import pallas as pl
from jax.experimental.pallas import tpu as pltpu


def _round_up(x: int, m: int) -> int:
    return ((x + m - 1) // m) * m


# --------------------------------------------------------------------------- #
# Kernel
# --------------------------------------------------------------------------- #
def _critic_kernel(n_layers: int, x_ref, *refs):
    """Fused MLP kernel.

    refs = (W1, b1, W2, b2, ..., Wn, bn, out_ref)
    x_ref is f32 (TM, D0); W_i are bf16 (VMEM-resident), b_i are f32 (1, Dout_p).
    """
    out_ref = refs[-1]

    h = x_ref[...].astype(jnp.bfloat16)            # f32 -> bf16 cast on the VPU
    for i in range(n_layers):
        w = refs[2 * i][...]                       # bf16 (Kin, Nout_p)
        b = refs[2 * i + 1][...]                   # f32  (1, Nout_p)
        acc = jnp.dot(h, w, preferred_element_type=jnp.float32) + b   # MXU, f32 accum
        acc = jnp.maximum(acc, 0.0)                # ReLU after every Linear (matches spec)
        if i + 1 < n_layers:
            h = acc.astype(jnp.bfloat16)           # bf16 feed for the next MXU matmul
        else:
            out_ref[...] = acc.astype(out_ref.dtype)   # lane-dense store (128-padded)


# --------------------------------------------------------------------------- #
# One-time parameter preparation (hoisted out of the forward path)
# --------------------------------------------------------------------------- #
class PreparedCritic(NamedTuple):
    flat: tuple        # (W1p, b1p, W2p, b2p, ...)  padded + cast, built once
    d_in: int
    out_dim: int
    out_dim_p: int
    n_layers: int


def prepare_critic_params(params: List[tuple], *, lane_align: int = 128) -> PreparedCritic:
    """Pad hidden/output feature dims to `lane_align` lanes and cast W to bf16 ONCE.

    Only the OUTPUT dim of each layer is padded; the first layer's contracting dim
    stays at the raw input_dim so x never needs a padded copy.  Zero padding is
    numerically exact (0-cols contribute nothing; relu(0)=0).
    For large hidden dims on v6e/v7x, pass lane_align=256 to keep the 256-wide MXU full.
    """
    n_layers = len(params)
    d_in = params[0][0].shape[0]
    dims = [d_in] + [w.shape[1] for w, _ in params]
    dims_p = [d_in] + [_round_up(d, lane_align) for d in dims[1:]]

    flat = []
    for li, (w, b) in enumerate(params):
        din, dout = w.shape
        wp = jnp.zeros((dims_p[li], dims_p[li + 1]), jnp.bfloat16)
        wp = wp.at[:din, :dout].set(w.astype(jnp.bfloat16))
        bp = jnp.zeros((1, dims_p[li + 1]), jnp.float32)
        bp = bp.at[:, :dout].set(jnp.asarray(b, jnp.float32).reshape(1, -1))
        flat.extend([wp, bp])
    return PreparedCritic(tuple(flat), d_in, dims[-1], dims_p[-1], n_layers)


# --------------------------------------------------------------------------- #
# Forward wrapper
# --------------------------------------------------------------------------- #
def critic_forward(x: jnp.ndarray, prepared: PreparedCritic, *,
                   block_rows: int = 512, out_dtype=jnp.float32) -> jnp.ndarray:
    """Run the fused Critic MLP as a single Pallas call.

    x: (B, input_dim) float32 (or bf16).  `prepared` comes from prepare_critic_params.
    """
    B, d_in = x.shape
    assert d_in == prepared.d_in, "input feature dim mismatch"
    n_layers = prepared.n_layers
    out_dim_p = prepared.out_dim_p

    # Batch tile: multiple of 16 (bf16 sublane packing); cap at ~B/2 so the grid
    # keeps >=2 steps (pipelining + dual-TC sharding on v7x) when B allows it.
    tm = min(block_rows, _round_up(B, 16))
    if B >= 32:
        tm = min(tm, _round_up((B + 1) // 2, 16))
    tm = max(16, tm)
    grid = (pl.cdiv(B, tm),)      # ragged last block handled by Pallas masking

    in_specs = [pl.BlockSpec((tm, d_in), lambda i: (i, 0))]
    for li in range(n_layers):
        w = prepared.flat[2 * li]
        b = prepared.flat[2 * li + 1]
        # Constant index_map -> weights/biases stay VMEM-resident across grid steps.
        # TODO(synk): for very large hidden dims on v7x (64 MiB VMEM) single-buffer
        # these (pipeline_mode=pl.Buffered(1)) or add a K-tiled grid axis.
        in_specs.append(pl.BlockSpec(w.shape, lambda i: (0, 0)))
        in_specs.append(pl.BlockSpec(b.shape, lambda i: (0, 0)))

    out_spec = pl.BlockSpec((tm, out_dim_p), lambda i: (i, 0))

    # Roofline hint + explicit VMEM budget (v5e scoped default is only 16 MiB).
    flops = 2 * B * sum(prepared.flat[2 * li].shape[0] * prepared.flat[2 * li].shape[1]
                        for li in range(n_layers))
    param_bytes = sum(a.size * a.dtype.itemsize for a in prepared.flat)
    out_itemsize = jnp.dtype(out_dtype).itemsize
    bytes_accessed = x.size * x.dtype.itemsize + param_bytes + B * out_dim_p * out_itemsize
    x_blk = tm * d_in * x.dtype.itemsize
    out_blk = tm * out_dim_p * out_itemsize
    vmem_limit = int(min(max(2 * (x_blk + out_blk) + 2 * param_bytes + (2 << 20), 8 << 20),
                         64 << 20))

    kernel = functools.partial(_critic_kernel, n_layers)
    out = pl.pallas_call(
        kernel,
        out_shape=jax.ShapeDtypeStruct((B, out_dim_p), out_dtype),
        grid=grid,
        in_specs=in_specs,
        out_specs=out_spec,
        compiler_params=pltpu.CompilerParams(
            dimension_semantics=("parallel",),      # batch tiles shard across TCs on v7x
            vmem_limit_bytes=vmem_limit),
        cost_estimate=pl.CostEstimate(
            flops=flops, transcendentals=0, bytes_accessed=bytes_accessed),
    )(x, *prepared.flat)

    # Slice off the lane padding; under jit this fuses with the consumer.
    return out[:, :prepared.out_dim]


# --------------------------------------------------------------------------- #
# Init + references
# --------------------------------------------------------------------------- #
def init_critic_params(key, input_dim: int, hidden_dims: List[int]):
    """Deterministic init mimicking nn.Linear's uniform(-1/sqrt(fan_in), +)."""
    params = []
    prev = input_dim
    for h in hidden_dims:
        key, kw, kb = jax.random.split(key, 3)
        bound = 1.0 / jnp.sqrt(prev)
        w = jax.random.uniform(kw, (prev, h), jnp.float32, -bound, bound)
        b = jax.random.uniform(kb, (1, h), jnp.float32, -bound, bound)
        params.append((w, b))
        prev = h
    return params


def critic_reference_f32(x, params):
    """Plain-JAX f32 reference (matches the PyTorch module exactly)."""
    h = x
    for w, b in params:
        h = jnp.maximum(h @ w + b.reshape(1, -1), 0.0)
    return h


def critic_reference_bf16(x, params):
    """Plain-JAX reference using the same bf16-operand / f32-accumulate math as the kernel."""
    n = len(params)
    h = x.astype(jnp.bfloat16)
    out = None
    for i, (w, b) in enumerate(params):
        acc = jnp.dot(h, w.astype(jnp.bfloat16),
                      preferred_element_type=jnp.float32) + b.reshape(1, -1).astype(jnp.float32)
        acc = jnp.maximum(acc, 0.0)
        if i + 1 < n:
            h = acc.astype(jnp.bfloat16)
        else:
            out = acc
    return out


if __name__ == "__main__":
    key = jax.random.PRNGKey(0)
    kx, kp = jax.random.split(key)

    batch = 32
    input_dim = 32
    hidden_dims = [64, 32]

    x = jax.random.normal(kx, (batch, input_dim), jnp.float32)
    params = init_critic_params(kp, input_dim, hidden_dims)

    # Pad + bf16-cast parameters ONCE (hoisted out of the per-call path).
    prepared = prepare_critic_params(params)
    fwd = jax.jit(lambda xx: critic_forward(xx, prepared))

    out = jax.block_until_ready(fwd(x))     # tm=16 here -> 2 grid steps, pipeline exercised
    assert out.shape == (batch, hidden_dims[-1])

    ref_bf16 = critic_reference_bf16(x, params)   # same bf16 math as the kernel
    ref_f32 = critic_reference_f32(x, params)     # module-exact f32 math
    assert jnp.allclose(out, ref_bf16, atol=1e-3, rtol=1e-3), "mismatch vs bf16 reference"
    assert jnp.allclose(out, ref_f32, atol=5e-2, rtol=5e-2), "mismatch vs f32 reference"

    print("KERNEL_OK")
</pallas_src>

<mosaic_0001>
module attributes {stable_mosaic.version = 11 : i64} {
  func.func @_critic_kernel(%arg0: i32, %arg1: memref<16x32xf32, #tpu.memory_space<vmem>>, %arg2: memref<32x128xbf16, #tpu.memory_space<vmem>>, %arg3: memref<1x128xf32, #tpu.memory_space<vmem>>, %arg4: memref<128x128xbf16, #tpu.memory_space<vmem>>, %arg5: memref<1x128xf32, #tpu.memory_space<vmem>>, %arg6: memref<16x128xf32, #tpu.memory_space<vmem>>) attributes {dimension_semantics = [#tpu.dimension_semantics<parallel>], iteration_bounds = array<i64: 2>, scalar_prefetch = 0 : i64, scratch_operands = 0 : i64, tpu.core_type = #tpu.core_type<tc>, window_params = [{transform_indices = @transform_0, window_bounds = array<i64: 16, 32>}, {pipeline_mode = #tpu.pipeline_mode<synchronous>, transform_indices = @transform_1, window_bounds = array<i64: 32, 128>}, {pipeline_mode = #tpu.pipeline_mode<synchronous>, transform_indices = @transform_2, window_bounds = array<i64: 1, 128>}, {pipeline_mode = #tpu.pipeline_mode<synchronous>, transform_indices = @transform_3, window_bounds = array<i64: 128, 128>}, {pipeline_mode = #tpu.pipeline_mode<synchronous>, transform_indices = @transform_4, window_bounds = array<i64: 1, 128>}, {transform_indices = @transform_5, window_bounds = array<i64: 16, 128>}]} {
    %c0 = arith.constant 0 : index
    %c0_0 = arith.constant 0 : index
    %0 = vector.load %arg1[%c0, %c0_0] : memref<16x32xf32, #tpu.memory_space<vmem>>, vector<16x32xf32>
    %1 = arith.truncf %0 : vector<16x32xf32> to vector<16x32xbf16>
    %c0_1 = arith.constant 0 : index
    %c0_2 = arith.constant 0 : index
    %2 = vector.load %arg2[%c0_1, %c0_2] : memref<32x128xbf16, #tpu.memory_space<vmem>>, vector<32x128xbf16>
    %c0_3 = arith.constant 0 : index
    %c0_4 = arith.constant 0 : index
    %3 = vector.load %arg3[%c0_3, %c0_4] : memref<1x128xf32, #tpu.memory_space<vmem>>, vector<1x128xf32>
    %cst = arith.constant dense<0.000000e+00> : vector<16x128xf32>
    %4 = tpu.matmul %1, %2, %cst {dimension_numbers = #tpu.dot_dimension_numbers<[1], [0], [0], [1], [0, 0, 1, 1], [], []>} : vector<16x32xbf16>, vector<32x128xbf16>, vector<16x128xf32> -> vector<16x128xf32>
    %5 = vector.broadcast %3 : vector<1x128xf32> to vector<16x128xf32>
    %6 = arith.addf %4, %5 : vector<16x128xf32>
    %cst_5 = arith.constant 0.000000e+00 : f32
    %7 = vector.broadcast %cst_5 : f32 to vector<16x128xf32>
    %8 = arith.maximumf %6, %7 : vector<16x128xf32>
    %9 = arith.truncf %8 : vector<16x128xf32> to vector<16x128xbf16>
    %c0_6 = arith.constant 0 : index
    %c0_7 = arith.constant 0 : index
    %10 = vector.load %arg4[%c0_6, %c0_7] : memref<128x128xbf16, #tpu.memory_space<vmem>>, vector<128x128xbf16>
    %c0_8 = arith.constant 0 : index
    %c0_9 = arith.constant 0 : index
    %11 = vector.load %arg5[%c0_8, %c0_9] : memref<1x128xf32, #tpu.memory_space<vmem>>, vector<1x128xf32>
    %cst_10 = arith.constant dense<0.000000e+00> : vector<16x128xf32>
    %12 = tpu.matmul %9, %10, %cst_10 {dimension_numbers = #tpu.dot_dimension_numbers<[1], [0], [0], [1], [0, 0, 1, 1], [], []>} : vector<16x128xbf16>, vector<128x128xbf16>, vector<16x128xf32> -> vector<16x128xf32>
    %13 = vector.broadcast %11 : vector<1x128xf32> to vector<16x128xf32>
    %14 = arith.addf %12, %13 : vector<16x128xf32>
    %cst_11 = arith.constant 0.000000e+00 : f32
    %15 = vector.broadcast %cst_11 : f32 to vector<16x128xf32>
    %16 = arith.maximumf %14, %15 : vector<16x128xf32>
    %c0_12 = arith.constant 0 : index
    %c0_13 = arith.constant 0 : index
    %17 = vector.load %arg6[%c0_12, %c0_13] : memref<16x128xf32, #tpu.memory_space<vmem>>, vector<16x128xf32>
    tpu.vector_store %arg6[%c0_12, %c0_13], %16 {strides = array<i32>} : memref<16x128xf32, #tpu.memory_space<vmem>>, vector<16x128xf32>,
    return
  }
  func.func @transform_0(%arg0: i32) -> (i32, i32) {
    %c0_i32 = arith.constant 0 : i32
    %c0_i32_0 = arith.constant 0 : i32
    return %arg0, %c0_i32 : i32, i32
  }
  func.func @transform_1(%arg0: i32) -> (i32, i32) {
    %c0_i32 = arith.constant 0 : i32
    %c0_i32_0 = arith.constant 0 : i32
    %c0_i32_1 = arith.constant 0 : i32
    return %c0_i32, %c0_i32_0 : i32, i32
  }
  func.func @transform_2(%arg0: i32) -> (i32, i32) {
    %c0_i32 = arith.constant 0 : i32
    %c0_i32_0 = arith.constant 0 : i32
    %c0_i32_1 = arith.constant 0 : i32
    return %c0_i32, %c0_i32_0 : i32, i32
  }
  func.func @transform_3(%arg0: i32) -> (i32, i32) {
    %c0_i32 = arith.constant 0 : i32
    %c0_i32_0 = arith.constant 0 : i32
    %c0_i32_1 = arith.constant 0 : i32
    return %c0_i32, %c0_i32_0 : i32, i32
  }
  func.func @transform_4(%arg0: i32) -> (i32, i32) {
    %c0_i32 = arith.constant 0 : i32
    %c0_i32_0 = arith.constant 0 : i32
    %c0_i32_1 = arith.constant 0 : i32
    return %c0_i32, %c0_i32_0 : i32, i32
  }
  func.func @transform_5(%arg0: i32) -> (i32, i32) {
    %c0_i32 = arith.constant 0 : i32
    %c0_i32_0 = arith.constant 0 : i32
    return %arg0, %c0_i32 : i32, i32
  }
}

</mosaic_0001>

<llo_original>
// kernel: _lambda_.1
$region0: #{_lambda_.1}
  #allocation0 [shape = 'u32[]', space=smem, size = 0x4, offset = 0x4, fixed_abs, tag = 'smem constant byte address 0x4 - core index']
  #allocation1 [shape = 'u32[72,128]{1,0:T(1,128)}', space=vmem, size = 0x9000, scoped, tag = 'internal scratch']
  %s0 = inlined_call_operand.hbm [shape: f32[32,32], index: 0, kind: input, shape index: {}]
  %s1 = inlined_call_operand.hbm [shape: bf16[32,128], index: 1, kind: input, shape index: {}]
  %s2 = inlined_call_operand.hbm [shape: f32[1,128], index: 2, kind: input, shape index: {}]
  %s3 = inlined_call_operand.hbm [shape: bf16[128,128], index: 3, kind: input, shape index: {}]
  %s4 = inlined_call_operand.vmem [shape: f32[1,128], index: 4, kind: input, shape index: {}]
  %s5 = inlined_call_operand.hbm [shape: f32[32,128], index: 5, kind: output, shape index: {}]
  %s6 = sld [smem:[#allocation0]]
  $region69: #{_lambda_.1} parent=0
    _
  %s8 = ssub.s32 1, %s6
  %s9 = scalar_select 0, %s8, %s6
  $region1: #{_lambda_.1} parent=0
    #allocation2 [shape = 'u8[16384]{0}', space=vmem, size = 0x4000, scoped, tag = 'input window, operand 0']
    #allocation3 [shape = 's32[2]{0}', space=sflag, size = 0x8, scoped, tag = 'scoped memory for _lambda_.1']
    #allocation4 [shape = 's32[2]{0}', space=sflag, size = 0x8, scoped, tag = 'scoped memory for _lambda_.1']
    #allocation5 [shape = 'u8[8192]{0}', space=vmem, size = 0x2000, scoped, tag = 'input window, operand 1, single buffered']
    #allocation6 [shape = 's32[1]{0}', space=sflag, size = 0x4, scoped, tag = 'scoped memory for _lambda_.1']
    #allocation7 [shape = 'u8[512]{0}', space=vmem, size = 0x400, scoped, tag = 'input window, operand 2, single buffered']
    #allocation8 [shape = 'u8[32768]{0}', space=vmem, size = 0x8000, scoped, tag = 'input window, operand 3, single buffered']
    #allocation9 [shape = 's32[1]{0}', space=sflag, size = 0x4, scoped, tag = 'scoped memory for _lambda_.1']
    #allocation10 [shape = 'u8[16384]{0}', space=vmem, size = 0x4000, scoped, tag = 'output window, operand 0']
    %10 = vsyncpa [#allocation3], 0
    %s11 = scalar_lea.sflag [#allocation3], 1
    %12 = vsyncpa %s11, 0
    %13 = vsyncpa [#allocation6], 0
    %14 = vsyncpa [#allocation9], 0
    %15 = vsyncpa [#allocation4], 0
    %s16 = scalar_lea.sflag [#allocation4], 1
    %17 = vsyncpa %s16, 0
    loop: start=0, step=1, limit=4
    $region2: #{_lambda_.1} parent=1 // loop_pre_header
      _
    $region3: #{_lambda_.1} parent=1 // loop_header
      %s19 = sphi 0, %s23
      %p20 = scmp.ge.s32.totalorder %s19, 4
      %s29 = sphi 0, %s31
      %s32 = sphi 0, %s29
      %s33 = sphi 0, %s32
      %s49 = sphi 0, %s33
      %s53 = sphi 0, %s53
      %s55 = sphi 0, %s53
      %s56 = sphi 0, %s55
      %s70 = sphi 0, %s56
      %s74 = sphi 0, %s74
      %s76 = sphi 0, %s74
      %s77 = sphi 0, %s76
      %s91 = sphi 0, %s77
      %s95 = sphi 0, %s95
      %s97 = sphi 0, %s95
      %s98 = sphi 0, %s97
      %s112 = sphi 0, %s98
      %s116 = sphi 0, %s116
      %s118 = sphi 0, %s116
      %s119 = sphi 0, %s118
      %s133 = sphi 0, %s119
      %s139 = sphi 0, %s141
      %s142 = sphi 0, %s139
      %s143 = sphi 0, %s142
      %s159 = sphi 0, %s143
    $region4: #{_lambda_.1} parent=1 // loop_header_branch
      %22 = sbr.rel (%p20) target = $region8
    $region5: #{_lambda_.1} parent=1 // loop_body
      %s24 = ssub.s32 %s19, 1
      %s25 = ssub.s32 %s19, 2
      %s26 = sadd.s32 %s19, 1
      %s27 = ssub.s32 %s19, %s26
      %p28 = scmp.eq.s32.totalorder %s27, 0
      %s30 = sadd.s32 %s29, 1
      %s31 = scalar_select %p28, %s29, %s30
      %p34 = pneg %p28
      %p35 = scmp.eq.s32.totalorder %s19, 1
      %p36 = por %p34, %p35
      %p37 = scmp.ne.s32.totalorder %s29, %s32
      %p38 = scmp.eq.s32.totalorder %s19, 0
      %p39 = por %p37, %p38
      %p40 = scmp.ne.s32.totalorder %s29, %s32
      %p41 = scmp.eq.s32.totalorder %s24, 1
      %p42 = por %p40, %p41
      %p43 = scmp.ne.s32.totalorder %s32, %s33
      %p44 = scmp.eq.s32.totalorder %s24, 0
      %p45 = por %p43, %p44
      %p46 = scmp.ne.s32.totalorder %s32, %s33
      %p47 = scmp.eq.s32.totalorder %s25, 1
      %p48 = por %p46, %p47
      %p50 = scmp.ne.s32.totalorder %s33, %s49
      %p51 = scmp.eq.s32.totalorder %s25, 0
      %p52 = por %p50, %p51
      %s54 = sadd.s32 %s53, 1
      %p57 = scmp.eq.s32.totalorder %s19, 1
      %p58 = scmp.ne.s32.totalorder %s53, %s55
      %p59 = scmp.eq.s32.totalorder %s19, 0
      %p60 = por %p58, %p59
      %p61 = scmp.ne.s32.totalorder %s53, %s55
      %p62 = scmp.eq.s32.totalorder %s24, 1
      %p63 = por %p61, %p62
      %p64 = scmp.ne.s32.totalorder %s55, %s56
      %p65 = scmp.eq.s32.totalorder %s24, 0
      %p66 = por %p64, %p65
      %p67 = scmp.ne.s32.totalorder %s55, %s56
      %p68 = scmp.eq.s32.totalorder %s25, 1
      %p69 = por %p67, %p68
      %p71 = scmp.ne.s32.totalorder %s56, %s70
      %p72 = scmp.eq.s32.totalorder %s25, 0
      %p73 = por %p71, %p72
      %s75 = sadd.s32 %s74, 1
      %p78 = scmp.eq.s32.totalorder %s19, 1
      %p79 = scmp.ne.s32.totalorder %s74, %s76
      %p80 = scmp.eq.s32.totalorder %s19, 0
      %p81 = por %p79, %p80
      %p82 = scmp.ne.s32.totalorder %s74, %s76
      %p83 = scmp.eq.s32.totalorder %s24, 1
      %p84 = por %p82, %p83
      %p85 = scmp.ne.s32.totalorder %s76, %s77
      %p86 = scmp.eq.s32.totalorder %s24, 0
      %p87 = por %p85, %p86
      %p88 = scmp.ne.s32.totalorder %s76, %s77
      %p89 = scmp.eq.s32.totalorder %s25, 1
      %p90 = por %p88, %p89
      %p92 = scmp.ne.s32.totalorder %s77, %s91
      %p93 = scmp.eq.s32.totalorder %s25, 0
      %p94 = por %p92, %p93
      %s96 = sadd.s32 %s95, 1
      %p99 = scmp.eq.s32.totalorder %s19, 1
      %p100 = scmp.ne.s32.totalorder %s95, %s97
      %p101 = scmp.eq.s32.totalorder %s19, 0
      %p102 = por %p100, %p101
      %p103 = scmp.ne.s32.totalorder %s95, %s97
      %p104 = scmp.eq.s32.totalorder %s24, 1
      %p105 = por %p103, %p104
      %p106 = scmp.ne.s32.totalorder %s97, %s98
      %p107 = scmp.eq.s32.totalorder %s24, 0
      %p108 = por %p106, %p107
      %p109 = scmp.ne.s32.totalorder %s97, %s98
      %p110 = scmp.eq.s32.totalorder %s25, 1
      %p111 = por %p109, %p110
      %p113 = scmp.ne.s32.totalorder %s98, %s112
      %p114 = scmp.eq.s32.totalorder %s25, 0
      %p115 = por %p113, %p114
      %s117 = sadd.s32 %s116, 1
      %p120 = scmp.eq.s32.totalorder %s19, 1
      %p121 = scmp.ne.s32.totalorder %s116, %s118
      %p122 = scmp.eq.s32.totalorder %s19, 0
      %p123 = por %p121, %p122
      %p124 = scmp.ne.s32.totalorder %s116, %s118
      %p125 = scmp.eq.s32.totalorder %s24, 1
      %p126 = por %p124, %p125
      %p127 = scmp.ne.s32.totalorder %s118, %s119
      %p128 = scmp.eq.s32.totalorder %s24, 0
      %p129 = por %p127, %p128
      %p130 = scmp.ne.s32.totalorder %s118, %s119
      %p131 = scmp.eq.s32.totalorder %s25, 1
      %p132 = por %p130, %p131
      %p134 = scmp.ne.s32.totalorder %s119, %s133
      %p135 = scmp.eq.s32.totalorder %s25, 0
      %p136 = por %p134, %p135
      %s137 = ssub.s32 %s19, %s26
      %p138 = scmp.eq.s32.totalorder %s137, 0
      %s140 = sadd.s32 %s139, 1
      %s141 = scalar_select %p138, %s139, %s140
      %p144 = pneg %p138
      %p145 = scmp.eq.s32.totalorder %s19, 1
      %p146 = por %p144, %p145
      %p147 = scmp.ne.s32.totalorder %s139, %s142
      %p148 = scmp.eq.s32.totalorder %s19, 0
      %p149 = por %p147, %p148
      %p150 = scmp.ne.s32.totalorder %s139, %s142
      %p151 = scmp.eq.s32.totalorder %s24, 1
      %p152 = por %p150, %p151
      %p153 = scmp.ne.s32.totalorder %s142, %s143
      %p154 = scmp.eq.s32.totalorder %s24, 0
      %p155 = por %p153, %p154
      %p156 = scmp.ne.s32.totalorder %s142, %s143
      %p157 = scmp.eq.s32.totalorder %s25, 1
      %p158 = por %p156, %p157
      %p160 = scmp.ne.s32.totalorder %s143, %s159
      %p161 = scmp.eq.s32.totalorder %s25, 0
      %p162 = por %p160, %p161
      %p163 = scmp.le.s32.totalorder 1, %s19
      %p164 = scmp.lt.s32.totalorder %s19, 3
      %p165 = pnand %p163, %p164
      %p166 = pneg %p165
      // Predicated region
      $region9: #{_lambda_.1} parent=5 // pred_check
        _
      $region10: #{_lambda_.1} parent=5 // pred_check_branch
        %168 = sbr.rel (%p165) target = $region12
      $region11: #{_lambda_.1} parent=5 // pred_region
        %s169 = ssub.s32 %s19, 1
        // Predicated region
        $region13: #{_lambda_.1} parent=11 // pred_check
          %p170 = pneg %p66
        $region14: #{_lambda_.1} parent=11 // pred_check_branch
          %172 = sbr.rel (%p170) target = $region16
        $region15: #{_lambda_.1} parent=11 // pred_region
          %174 = vsyncadd [#allocation6], 0
          %s175 = sshll.u32 %s1, 4
          %s176 = int_to_ptr.hbm [resolvable:$true] %s175
          %s177 = sshll.u32 [#allocation5], 4
          %s178 = int_to_ptr.vmem [resolvable:$true] %s177
          %183 = dma.hbm_to_vmem [thread:$0]  %s176, 256, %s178, [#allocation6], 64, 64, 4
        $region16: #{_lambda_.1} parent=11 // pred_fallthru
          _
        // Predicated region
        $region17: #{_lambda_.1} parent=11 // pred_check
          %p184 = pneg %p87
        $region18: #{_lambda_.1} parent=11 // pred_check_branch
          %186 = sbr.rel (%p184) target = $region20
        $region19: #{_lambda_.1} parent=11 // pred_region
          %188 = vsyncadd [#allocation6], 0
          %s190 = sshll.u32 %s2, 4
          %s191 = int_to_ptr.hbm [resolvable:$true] %s190
          %s192 = sshll.u32 [#allocation7], 4
          %s193 = int_to_ptr.vmem [resolvable:$true] %s192
          %195 = dma.hbm_to_vmem [thread:$0]  %s191, 16, %s193, [#allocation6]
        $region20: #{_lambda_.1} parent=11 // pred_fallthru
          _
        // Predicated region
        $region21: #{_lambda_.1} parent=11 // pred_check
          %p196 = pneg %p108
        $region22: #{_lambda_.1} parent=11 // pred_check_branch
          %198 = sbr.rel (%p196) target = $region24
        $region23: #{_lambda_.1} parent=11 // pred_region
          %200 = vsyncadd [#allocation9], 0
          %s201 = sshll.u32 %s3, 4
          %s202 = int_to_ptr.hbm [resolvable:$true] %s201
          %s203 = sshll.u32 [#allocation8], 4
          %s204 = int_to_ptr.vmem [resolvable:$true] %s203
          %209 = dma.hbm_to_vmem [thread:$0]  %s202, 1024, %s204, [#allocation9], 64, 64, 4
        $region24: #{_lambda_.1} parent=11 // pred_fallthru
          _
        // Predicated region
        $region25: #{_lambda_.1} parent=11 // pred_check
          %p210 = pneg %p129
        $region26: #{_lambda_.1} parent=11 // pred_check_branch
          %212 = sbr.rel (%p210) target = $region28
        $region27: #{_lambda_.1} parent=11 // pred_region
          _
        $region28: #{_lambda_.1} parent=11 // pred_fallthru
          _
      $region12: #{_lambda_.1} parent=5 // pred_fallthru
        _
      %p213 = scmp.lt.s32.totalorder %s19, 2
      // Predicated region
      $region29: #{_lambda_.1} parent=5 // pred_check
        %p214 = pneg %p213
      $region30: #{_lambda_.1} parent=5 // pred_check_branch
        %216 = sbr.rel (%p214) target = $region32
      $region31: #{_lambda_.1} parent=5 // pred_region
        // Predicated region
        $region33: #{_lambda_.1} parent=31 // pred_check
          %p217 = pneg %p39
        $region34: #{_lambda_.1} parent=31 // pred_check_branch
          %219 = sbr.rel (%p217) target = $region36
        $region35: #{_lambda_.1} parent=31 // pred_region
          %s220 = sand.u32 %s29, 1
          %s221 = scalar_lea.sflag [#allocation3], %s220
          %s222 = sand.u32 %s29, 1
          %s223 = smul.addr %s222, 16
          %s224 = scalar_lea.vmem [#allocation2], %s223
          %s225 = smul.u32 2, %s19
          %227 = vsyncadd %s221, 0
          %s228 = smul.addr %s225, 8
          %s229 = scalar_lea.hbm %s0, %s228
          %s230 = sshll.u32 %s229, 4
          %s231 = int_to_ptr.hbm [resolvable:$true] %s230
          %s232 = sshll.u32 %s224, 4
          %s233 = int_to_ptr.vmem [resolvable:$true] %s232
          %238 = dma.hbm_to_vmem [thread:$0]  %s231, 256, %s233, %s221, 128, 128, 8
        $region36: #{_lambda_.1} parent=31 // pred_fallthru
          _
      $region32: #{_lambda_.1} parent=5 // pred_fallthru
        _
      %p239 = scmp.le.s32.totalorder 1, %s19
      %p240 = scmp.lt.s32.totalorder %s19, 3
      %p241 = pnand %p239, %p240
      %p242 = pneg %p241
      // Predicated region
      $region37: #{_lambda_.1} parent=5 // pred_check
        _
      $region38: #{_lambda_.1} parent=5 // pred_check_branch
        %244 = sbr.rel (%p241) target = $region40
      $region39: #{_lambda_.1} parent=5 // pred_region
        %s245 = ssub.s32 %s19, 1
        %s246 = sand.u32 %s32, 1
        %s247 = scalar_lea.sflag [#allocation3], %s246
        %s248 = sand.u32 %s32, 1
        %s249 = smul.addr %s248, 16
        %s250 = scalar_lea.vmem [#allocation2], %s249
        // Predicated region
        $region41: #{_lambda_.1} parent=39 // pred_check
          %p251 = pneg %p45
        $region42: #{_lambda_.1} parent=39 // pred_check_branch
          %253 = sbr.rel (%p251) target = $region44
        $region43: #{_lambda_.1} parent=39 // pred_region
          %255 = dma.done %s247, 256
        $region44: #{_lambda_.1} parent=39 // pred_fallthru
          _
        // Predicated region
        $region45: #{_lambda_.1} parent=39 // pred_check
          %p256 = pneg %p66
        $region46: #{_lambda_.1} parent=39 // pred_check_branch
          %258 = sbr.rel (%p256) target = $region48
        $region47: #{_lambda_.1} parent=39 // pred_region
          %260 = dma.done [#allocation6], 256
        $region48: #{_lambda_.1} parent=39 // pred_fallthru
          _
        // Predicated region
        $region49: #{_lambda_.1} parent=39 // pred_check
          %p261 = pneg %p87
        $region50: #{_lambda_.1} parent=39 // pred_check_branch
          %263 = sbr.rel (%p261) target = $region52
        $region51: #{_lambda_.1} parent=39 // pred_region
          %265 = dma.done [#allocation6], 16
        $region52: #{_lambda_.1} parent=39 // pred_fallthru
          _
        // Predicated region
        $region53: #{_lambda_.1} parent=39 // pred_check
          %p266 = pneg %p108
        $region54: #{_lambda_.1} parent=39 // pred_check_branch
          %268 = sbr.rel (%p266) target = $region56
        $region55: #{_lambda_.1} parent=39 // pred_region
          %270 = dma.done [#allocation9], 1024
        $region56: #{_lambda_.1} parent=39 // pred_fallthru
          _
        %s271 = sand.u32 %s32, 1
        %s272 = scalar_lea.sflag [#allocation3], %s271
        %s273 = sand.u32 %s32, 1
        %s274 = smul.addr %s273, 16
        %s275 = scalar_lea.vmem [#allocation2], %s274
        %p276 = pneg %p45
        %p277 = pneg %p42
        %p278 = pneg %p66
        %p279 = pneg %p63
        %p280 = pneg %p87
        %p281 = pneg %p84
        %p282 = pneg %p108
        %p283 = pneg %p105
        %p284 = pneg %p129
        %p285 = pneg %p126
        %p286 = pneg %p155
        %p287 = pneg %p152
        %s288 = sand.u32 %s142, 1
        %s289 = scalar_lea.sflag [#allocation4], %s288
        %s290 = sand.u32 %s142, 1
        %s291 = smul.addr %s290, 16
        %s292 = scalar_lea.vmem [#allocation10], %s291
        %s293 = smul.u32 2, %s24
        %s294 = smul.u32 2, %s24
        %v296 = vld [vmem:[%s250] sm:$0xff]
        %v297 = vld [vmem:[%s250 + $0x8] sm:$0xff]
        %v298 = vpack.c.bf16 %v297, %v296
        %v299 = vld [vmem:[#allocation5] sm:$0xf]
        %v300 = vld [vmem:[#allocation5 + $0x4] sm:$0xf]
        %v301 = vld [vmem:[#allocation5 + $0x8] sm:$0xf]
        %v302 = vld [vmem:[#allocation5 + $0xc] sm:$0xf]
        %v303 = vld [vmem:[#allocation7] sm:$0x1]
        %v305 = vperm.slane %v303, 0
        %v311 = vunpack.c.l.b16 %v299
        %v312 = vunpack.c.l.b16 %v300
        %v313 = vunpack.c.l.b16 %v301
        %v314 = vunpack.c.l.b16 %v302
        %v315 = vpack.c.b16 %v312, %v311
        %v316 = vpack.c.b16 %v314, %v313
        %vm319 = vcmask 261120
        %v321 = vsel %vm319, %v298, 0
        %323 = vmatpush.bf16.msra.mxu0 0
        %324 = vmatpush.bf16.msra.mxu0 0
        %325 = vmatpush.bf16.msra.mxu0 0
        %326 = vmatpush.bf16.msra.mxu0 0
        %327 = vmatpush.bf16.msra.mxu0 0
        %328 = vmatpush.bf16.msra.mxu0 0
        %329 = vmatpush.bf16.msra.mxu0 %v316
        %330 = vmatpush.bf16.msra.mxu0 %v315
        %331 = vmatmul.bf16.gmra.mxu0 %v321
        %v332 = vpop.f32.mrf.mxu0
        %v333 = vadd.f32 %v305, %v332
        %v334 = vpop.f32.mrf.mxu0
        %v335 = vadd.f32 %v305, %v334
        %336 = vdwg.mxu0
        %v337 = vmax.f32 %v333, 0.0
        %v338 = vmax.f32 %v335, 0.0
        %v339 = vpack.c.bf16 %v338, %v337
        %v340 = vld [vmem:[#allocation8] sm:$0xf]
        %v341 = vld [vmem:[#allocation8 + $0x4] sm:$0xf]
        %v342 = vld [vmem:[#allocation8 + $0x8] sm:$0xf]
        %v343 = vld [vmem:[#allocation8 + $0xc] sm:$0xf]
        %v344 = vld [vmem:[#allocation8 + $0x10] sm:$0xf]
        %v345 = vld [vmem:[#allocation8 + $0x14] sm:$0xf]
        %v346 = vld [vmem:[#allocation8 + $0x18] sm:$0xf]
        %v347 = vld [vmem:[#allocation8 + $0x1c] sm:$0xf]
        %v348 = vld [vmem:[#allocation8 + $0x20] sm:$0xf]
        %v349 = vld [vmem:[#allocation8 + $0x24] sm:$0xf]
        %v350 = vld [vmem:[#allocation8 + $0x28] sm:$0xf]
        %v351 = vld [vmem:[#allocation8 + $0x2c] sm:$0xf]
        %v352 = vld [vmem:[#allocation8 + $0x30] sm:$0xf]
        %v353 = vld [vmem:[#allocation8 + $0x34] sm:$0xf]
        %v354 = vld [vmem:[#allocation8 + $0x38] sm:$0xf]
        %v355 = vld [vmem:[#allocation8 + $0x3c] sm:$0xf]
        %v356 = vld [vmem:[%s4] sm:$0x1]
        %v358 = vperm.slane %v356, 0
        %v376 = vunpack.c.l.b16 %v340
        %v377 = vunpack.c.l.b16 %v341
        %v378 = vunpack.c.l.b16 %v342
        %v379 = vunpack.c.l.b16 %v343
        %v380 = vunpack.c.l.b16 %v344
        %v381 = vunpack.c.l.b16 %v345
        %v382 = vunpack.c.l.b16 %v346
        %v383 = vunpack.c.l.b16 %v347
        %v384 = vunpack.c.l.b16 %v348
        %v385 = vunpack.c.l.b16 %v349
        %v386 = vunpack.c.l.b16 %v350
        %v387 = vunpack.c.l.b16 %v351
        %v388 = vunpack.c.l.b16 %v352
        %v389 = vunpack.c.l.b16 %v353
        %v390 = vunpack.c.l.b16 %v354
        %v391 = vunpack.c.l.b16 %v355
        %v392 = vpack.c.b16 %v377, %v376
        %v393 = vpack.c.b16 %v379, %v378
        %v394 = vpack.c.b16 %v381, %v380
        %v395 = vpack.c.b16 %v383, %v382
        %v396 = vpack.c.b16 %v385, %v384
        %v397 = vpack.c.b16 %v387, %v386
        %v398 = vpack.c.b16 %v389, %v388
        %v399 = vpack.c.b16 %v391, %v390
        %408 = vmatpush.bf16.msra.mxu0 %v399
        %409 = vmatpush.bf16.msra.mxu0 %v398
        %410 = vmatpush.bf16.msra.mxu0 %v397
        %411 = vmatpush.bf16.msra.mxu0 %v396
        %412 = vmatpush.bf16.msra.mxu0 %v395
        %413 = vmatpush.bf16.msra.mxu0 %v394
        %414 = vmatpush.bf16.msra.mxu0 %v393
        %415 = vmatpush.bf16.msra.mxu0 %v392
        %416 = vmatmul.bf16.gmra.mxu0 %v339
        %v417 = vpop.f32.mrf.mxu0
        %v418 = vadd.f32 %v358, %v417
        %v419 = vpop.f32.mrf.mxu0
        %v420 = vadd.f32 %v358, %v419
        %421 = vdwg.mxu0
        %v422 = vmax.f32 %v418, 0.0
        %v423 = vmax.f32 %v420, 0.0
        %424 = vst [vmem:[%s292] sm:$0xff] %v422
        %425 = vst [vmem:[%s292 + $0x8] sm:$0xff] %v423
        %s426 = sand.u32 %s142, 1
        %s427 = scalar_lea.sflag [#allocation4], %s426
        %s428 = sand.u32 %s142, 1
        %s429 = smul.addr %s428, 16
        %s430 = scalar_lea.vmem [#allocation10], %s429
        // Predicated region
        $region57: #{_lambda_.1} parent=39 // pred_check
          %p431 = pneg %p152
        $region58: #{_lambda_.1} parent=39 // pred_check_branch
          %433 = sbr.rel (%p431) target = $region60
        $region59: #{_lambda_.1} parent=39 // pred_region
          %s434 = smul.u32 2, %s24
          %436 = vsyncadd %s427, 0
          %s437 = smul.addr %s434, 8
          %s438 = scalar_lea.hbm %s5, %s437
          %s439 = sshll.u32 %s430, 4
          %s440 = int_to_ptr.vmem [resolvable:$true] %s439
          %s441 = sshll.u32 %s438, 4
          %s442 = int_to_ptr.hbm [resolvable:$true] %s441
          %447 = dma.vmem_to_hbm [thread:$0]  %s440, 256, %s442, %s427, 128, 128, 8
        $region60: #{_lambda_.1} parent=39 // pred_fallthru
          _
      $region40: #{_lambda_.1} parent=5 // pred_fallthru
        _
      %p448 = scmp.le.s32.totalorder 2, %s19
      // Predicated region
      $region61: #{_lambda_.1} parent=5 // pred_check
        %p449 = pneg %p448
      $region62: #{_lambda_.1} parent=5 // pred_check_branch
        %451 = sbr.rel (%p449) target = $region64
      $region63: #{_lambda_.1} parent=5 // pred_region
        %s452 = ssub.s32 %s19, 2
        // Predicated region
        $region65: #{_lambda_.1} parent=63 // pred_check
          %p453 = pneg %p158
        $region66: #{_lambda_.1} parent=63 // pred_check_branch
          %455 = sbr.rel (%p453) target = $region68
        $region67: #{_lambda_.1} parent=63 // pred_region
          %s456 = sand.u32 %s143, 1
          %s457 = scalar_lea.sflag [#allocation4], %s456
          %s458 = sand.u32 %s143, 1
          %s459 = smul.addr %s458, 16
          %s460 = scalar_lea.vmem [#allocation10], %s459
          %462 = dma.done %s457, 256
        $region68: #{_lambda_.1} parent=63 // pred_fallthru
          _
      $region64: #{_lambda_.1} parent=5 // pred_fallthru
        _
    $region6: #{_lambda_.1} parent=1 // loop_footer
      %s23 = sadd.s32 1, %s19
    $region7: #{_lambda_.1} parent=1 // loop_footer_branch
      %18 = sbr.rel target = $region3
    $region8: #{_lambda_.1} parent=1 // loop_exit
      _
    %463 = vsyncpa [#allocation3], 1
    %s464 = scalar_lea.sflag [#allocation3], 1
    %465 = vsyncpa %s464, 1
    %466 = vsyncpa [#allocation6], 1
    %467 = vsyncpa [#allocation9], 1
    %468 = vsyncpa [#allocation4], 1
    %s469 = scalar_lea.sflag [#allocation4], 1
    %470 = vsyncpa %s469, 1

</llo_original>
